<compile_context>
chip_gen: v7x
topology: tpu7x:2x2x1
jax: 0.10.0
libtpu: 0.0.40
codegen_flags: <defaults>
</compile_context>

<pallas_src>
import math

import jax
import jax.numpy as jnp
from jax.experimental import pallas as pl
from jax.experimental.pallas import tpu as pltpu

_SQRT_2_OVER_PI = math.sqrt(2.0 / math.pi)
_COEF = 0.44715  # reproduced verbatim from the module
# TODO(synk): 0.44715 is 10x the standard GELU constant (0.044715); kept as-is to match the spec.

_LANE_CHOICES = (2048, 1024, 512, 256, 128)
_PAD_LANE = 1024            # 8 sublanes x 128 lanes -> always a legal, lane-dense tile
_BLOCK_BYTE_CAP = 4 << 20   # mem-bound elementwise plateaus at ~1-4 MiB tiles


def _gelu_kernel(x_ref, o_ref):
    xf = x_ref[...].astype(jnp.float32)
    # sqrt(2/pi) * (x + c*x^3) == (sqrt(2/pi)*x) * (1 + c*x*x)   (one fewer vmul)
    inner = (_SQRT_2_OVER_PI * xf) * (1.0 + _COEF * xf * xf)
    o_ref[...] = (0.5 * xf * (1.0 + jnp.tanh(inner))).astype(o_ref.dtype)


def gelu_ref(x):
    xf = x.astype(jnp.float32)
    y = 0.5 * xf * (1.0 + jnp.tanh(_SQRT_2_OVER_PI * (xf + _COEF * xf ** 3)))
    return y.astype(x.dtype)


def _vmem_capacity_bytes():
    try:
        return int(pltpu.get_tpu_info().vmem_capacity_bytes)
    except Exception:
        return 64 << 20  # conservative (v7x per-TC VMEM); safe on v5e/v6e too


def _choose_layout(total):
    """Lane-dense (rows, lane) layout; pad when total doesn't divide a >=128 lane."""
    for lane in _LANE_CHOICES:
        if total % lane == 0:
            return total // lane, lane, 0
    padded = pl.cdiv(total, _PAD_LANE) * _PAD_LANE
    return padded // _PAD_LANE, _PAD_LANE, padded - total


def gelu_pallas(x, *, in_place=False):
    """Elementwise GELU with the module's exact tanh-approximation coefficients."""
    orig_shape = x.shape
    if x.ndim == 0 or x.size == 0:
        return gelu_ref(x)

    total = x.size
    m, n, pad = _choose_layout(total)
    x_flat = x.reshape(-1)
    if pad:
        # GELU(0) == 0, so zero padding is numerically inert; sliced off below.
        x_flat = jnp.pad(x_flat, (0, pad))
        in_place = False  # the padded buffer cannot alias the original input
    x2d = x_flat.reshape(m, n)

    # HBM<->VMEM buffers live in the I/O dtype; f32 temporaries stay in vregs.
    elem_bytes = jnp.dtype(x.dtype).itemsize
    block_budget = min(_vmem_capacity_bytes() // 8, _BLOCK_BYTE_CAP)

    if m <= 8:
        tm = m  # tiny input: single full-extent block
    else:
        # Rows that fit the byte budget (multiple of 8 sublanes).
        rows_budget = max(8, (block_budget // (n * elem_bytes)) // 8 * 8)
        # Force >= 8 grid steps whenever m >= 64 so the BlockSpec pipeline truly
        # overlaps load/compute/store, and v7x megacore keeps >= 4 steps per TC.
        rows_cap = max(8, (m // 8) // 8 * 8)
        tm = min(rows_budget, rows_cap, m)

    num_steps = pl.cdiv(m, tm)
    grid = (num_steps,)  # ragged last block handled by Pallas

    # Triple-buffer the streaming input when there are enough steps to benefit.
    if num_steps >= 4:
        in_spec = pl.BlockSpec((tm, n), lambda i: (i, 0),
                               pipeline_mode=pl.Buffered(3))
    else:
        in_spec = pl.BlockSpec((tm, n), lambda i: (i, 0))

    out = pl.pallas_call(
        _gelu_kernel,
        out_shape=jax.ShapeDtypeStruct((m, n), x.dtype),
        grid_spec=pltpu.PrefetchScalarGridSpec(
            num_scalar_prefetch=0,
            grid=grid,
            in_specs=[in_spec],
            out_specs=pl.BlockSpec((tm, n), lambda i: (i, 0)),
        ),
        compiler_params=pltpu.CompilerParams(
            dimension_semantics=("parallel",),
            # Blocks are capped at 4 MiB; <=3 input + 2 output buffers fit well
            # under 32 MiB on every generation (incl. v7x's 64 MiB VMEM).
            vmem_limit_bytes=32 << 20,
        ),
        # Optional in-place update (callers must donate x) to halve HBM allocations.
        input_output_aliases=({0: 0} if in_place else {}),
    )(x2d)

    out_flat = out.reshape(-1)
    if pad:
        out_flat = out_flat[:total]
    return out_flat.reshape(orig_shape)


if __name__ == "__main__":
    key = jax.random.PRNGKey(0)

    # Small GPT-2-ish activation: (batch=2, seq=8, hidden=32) -> single-block path.
    x = jax.random.normal(key, (2, 8, 32), dtype=jnp.float32)
    y = gelu_pallas(x)
    jax.block_until_ready(y)
    assert y.shape == x.shape and y.dtype == x.dtype
    assert jnp.allclose(y, gelu_ref(x), atol=1e-5, rtol=1e-5)

    # Multi-step pipelined path (GPT-2 small MLP width 4*768=3072), exercises
    # >=8 grid steps + Buffered(3) input.
    x2 = jax.random.normal(jax.random.PRNGKey(1), (2, 128, 3072), dtype=jnp.float32)
    y2 = gelu_pallas(x2)
    jax.block_until_ready(y2)
    assert jnp.allclose(y2, gelu_ref(x2), atol=1e-5, rtol=1e-5)

    # bf16 input (itemsize-based tile budget) on the same multi-step path.
    x3 = jax.random.normal(jax.random.PRNGKey(2), (2, 8, 3072), dtype=jnp.bfloat16)
    y3 = gelu_pallas(x3)
    jax.block_until_ready(y3)
    assert y3.dtype == jnp.bfloat16
    assert jnp.allclose(y3.astype(jnp.float32), gelu_ref(x3).astype(jnp.float32),
                        atol=5e-2, rtol=5e-2)

    # Awkward shape (693 elements) -> pad-to-1024 path, no narrow-lane stores.
    x4 = jax.random.normal(jax.random.PRNGKey(3), (3, 7, 33), dtype=jnp.float32)
    y4 = gelu_pallas(x4)
    jax.block_until_ready(y4)
    assert jnp.allclose(y4, gelu_ref(x4), atol=1e-5, rtol=1e-5)

    print("KERNEL_OK")
</pallas_src>

<mosaic_0001>
module attributes {stable_mosaic.version = 11 : i64} {
  func.func @_gelu_kernel(%arg0: i32, %arg1: memref<1x512xf32, #tpu.memory_space<vmem>>, %arg2: memref<1x512xf32, #tpu.memory_space<vmem>>) attributes {dimension_semantics = [#tpu.dimension_semantics<parallel>], iteration_bounds = array<i64: 1>, scalar_prefetch = 0 : i64, scratch_operands = 0 : i64, tpu.core_type = #tpu.core_type<tc>, window_params = [{transform_indices = @transform_0, window_bounds = array<i64: 1, 512>}, {transform_indices = @transform_1, window_bounds = array<i64: 1, 512>}]} {
    %c0 = arith.constant 0 : index
    %c0_0 = arith.constant 0 : index
    %0 = vector.load %arg1[%c0, %c0_0] : memref<1x512xf32, #tpu.memory_space<vmem>>, vector<1x512xf32>
    %cst = arith.constant 0.797884583 : f32
    %1 = vector.broadcast %cst : f32 to vector<1x512xf32>
    %2 = arith.mulf %1, %0 : vector<1x512xf32>
    %cst_1 = arith.constant 4.471500e-01 : f32
    %3 = vector.broadcast %cst_1 : f32 to vector<1x512xf32>
    %4 = arith.mulf %3, %0 : vector<1x512xf32>
    %5 = arith.mulf %4, %0 : vector<1x512xf32>
    %cst_2 = arith.constant 1.000000e+00 : f32
    %6 = vector.broadcast %cst_2 : f32 to vector<1x512xf32>
    %7 = arith.addf %6, %5 : vector<1x512xf32>
    %8 = arith.mulf %2, %7 : vector<1x512xf32>
    %cst_3 = arith.constant 5.000000e-01 : f32
    %9 = vector.broadcast %cst_3 : f32 to vector<1x512xf32>
    %10 = arith.mulf %9, %0 : vector<1x512xf32>
    %11 = math.tanh %8 : vector<1x512xf32>
    %cst_4 = arith.constant 1.000000e+00 : f32
    %12 = vector.broadcast %cst_4 : f32 to vector<1x512xf32>
    %13 = arith.addf %12, %11 : vector<1x512xf32>
    %14 = arith.mulf %10, %13 : vector<1x512xf32>
    %c0_5 = arith.constant 0 : index
    %c0_6 = arith.constant 0 : index
    %15 = vector.load %arg2[%c0_5, %c0_6] : memref<1x512xf32, #tpu.memory_space<vmem>>, vector<1x512xf32>
    tpu.vector_store %arg2[%c0_5, %c0_6], %14 {strides = array<i32>} : memref<1x512xf32, #tpu.memory_space<vmem>>, vector<1x512xf32>,
    return
  }
  func.func @transform_0(%arg0: i32) -> (i32, i32) {
    %c0_i32 = arith.constant 0 : i32
    %c0_i32_0 = arith.constant 0 : i32
    return %arg0, %c0_i32 : i32, i32
  }
  func.func @transform_1(%arg0: i32) -> (i32, i32) {
    %c0_i32 = arith.constant 0 : i32
    %c0_i32_0 = arith.constant 0 : i32
    return %arg0, %c0_i32 : i32, i32
  }
}

</mosaic_0001>

<llo_original>
// kernel: tpu_custom_call.1
$region0: #{tpu_custom_call.1}
  #allocation0 [shape = 'u32[]', space=smem, size = 0x4, offset = 0x4, fixed_abs, tag = 'smem constant byte address 0x4 - core index']
  #allocation1 [shape = 'u32[144,128]{1,0:T(1,128)}', space=vmem, size = 0x12000, scoped, tag = 'internal scratch']
  %s0 = inlined_call_operand.hbm [shape: f32[1,512], index: 0, kind: input, shape index: {}]
  %s1 = inlined_call_operand.hbm [shape: f32[1,512], index: 1, kind: output, shape index: {}]
  %s2 = sld [smem:[#allocation0]]
  $region18: #{tpu_custom_call.1} parent=0
    _
  %s4 = ssub.s32 1, %s2
  %s5 = scalar_select 0, %s4, %s2
  $region1: #{tpu_custom_call.1} parent=0
    #allocation2 [shape = 'u8[2048]{0}', space=vmem, size = 0x800, scoped, tag = 'input window, operand 0, single buffered']
    #allocation3 [shape = 's32[1]{0}', space=sflag, size = 0x4, scoped, tag = 'scoped memory for tpu_custom_call.1']
    #allocation4 [shape = 's32[1]{0}', space=sflag, size = 0x4, scoped, tag = 'scoped memory for tpu_custom_call.1']
    #allocation5 [shape = 'u8[2048]{0}', space=vmem, size = 0x800, scoped, tag = 'output window, operand 0, single buffered']
    %6 = vsyncpa [#allocation3], 0
    %7 = vsyncpa [#allocation4], 0
    // Predicated region
    $region2: #{tpu_custom_call.1} parent=1 // pred_check
      _
    $region3: #{tpu_custom_call.1} parent=1 // pred_check_branch
      %9 = sbr.rel (0) target = $region5
    $region4: #{tpu_custom_call.1} parent=1 // pred_region
      %s11 = ssub.s32 64, 64
      %12 = vsyncadd [#allocation3], %s11
      %s14 = sshll.u32 [#allocation2], 4
      %s15 = int_to_ptr.vmem [resolvable:$true] %s14
      %17 = dma.hbm_to_vmem [thread:$0]  %s0, 64, %s15, [#allocation3]
    $region5: #{tpu_custom_call.1} parent=1 // pred_fallthru
      _
    // Predicated region
    $region6: #{tpu_custom_call.1} parent=1 // pred_check
      _
    $region7: #{tpu_custom_call.1} parent=1 // pred_check_branch
      %19 = sbr.rel (0) target = $region9
    $region8: #{tpu_custom_call.1} parent=1 // pred_region
      %20 = dma.done [#allocation3], 64
    $region9: #{tpu_custom_call.1} parent=1 // pred_fallthru
      _
    %v21 = vld [vmem:[#allocation2] sm:$0xf]
    %v22 = vmul.f32 %v21, 0.7978846
    %v23 = vmul.f32 %v21, 0.44715
    %v24 = vmul.f32 %v23, %v21
    %v25 = vadd.f32 %v24, 1.0
    %v26 = vmul.f32 %v22, %v25
    %v27 = vmul.f32 %v21, 0.5
    %v28 = vtanh.pop %v26
    %v29 = vadd.f32 %v28, 1.0
    %v30 = vmul.f32 %v27, %v29
    %v31 = vlaneseq
    %vm32 = vcmp.ge.s32.totalorder %v31, 0
    %vm33 = vcmp.lt.s32.totalorder %v31, 512
    %vm34 = vmand %vm32, %vm33
    %35 = vst.msk [vmem:[#allocation5] sm:$0xf] %vm34, %v30
    // Predicated region
    $region10: #{tpu_custom_call.1} parent=1 // pred_check
      _
    $region11: #{tpu_custom_call.1} parent=1 // pred_check_branch
      %37 = sbr.rel (0) target = $region13
    $region12: #{tpu_custom_call.1} parent=1 // pred_region
      %s39 = ssub.s32 64, 64
      %40 = vsyncadd [#allocation4], %s39
      %s42 = sshll.u32 [#allocation5], 4
      %s43 = int_to_ptr.vmem [resolvable:$true] %s42
      %45 = dma.vmem_to_hbm [thread:$0]  %s43, 64, %s1, [#allocation4]
    $region13: #{tpu_custom_call.1} parent=1 // pred_fallthru
      _
    // Predicated region
    $region14: #{tpu_custom_call.1} parent=1 // pred_check
      _
    $region15: #{tpu_custom_call.1} parent=1 // pred_check_branch
      %47 = sbr.rel (0) target = $region17
    $region16: #{tpu_custom_call.1} parent=1 // pred_region
      %48 = dma.done [#allocation4], 64
    $region17: #{tpu_custom_call.1} parent=1 // pred_fallthru
      _
    %49 = vsyncpa [#allocation3], 1
    %50 = vsyncpa [#allocation4], 1

</llo_original>
